<compile_context>
chip_gen: v6e
topology: v6e:2x2x1
jax: 0.10.0
libtpu: 0.0.40
codegen_flags: <defaults>
</compile_context>

<pallas_src>
import numpy as np
import jax
import jax.numpy as jnp
from jax.experimental import pallas as pl
from jax.experimental.pallas import tpu as pltpu


# ----------------------------------------------------------------------------
# Fused MLP kernels
# ----------------------------------------------------------------------------
def _fused_mlp_kernel_single(x_ref, wfc_ref, wproj_ref, o_ref):
    """Hidden dim fits in one tile: no accumulator, no init/finalize gates.

    x_ref:    [tm, K]  bf16
    wfc_ref:  [K,  H]  bf16   (pre-transposed [in, out] layout)
    wproj_ref:[H,  D]  bf16   (pre-transposed [in, out] layout)
    o_ref:    [tm, D]  out dtype
    """
    h = jnp.dot(x_ref[...], wfc_ref[...], preferred_element_type=jnp.float32)
    h = jnp.square(jnp.maximum(h, 0.0)).astype(jnp.bfloat16)
    o_ref[...] = jnp.dot(h, wproj_ref[...],
                         preferred_element_type=jnp.float32).astype(o_ref.dtype)


def _fused_mlp_kernel_acc(x_ref, wfc_ref, wproj_ref, o_ref, acc_ref):
    """Large hidden dim: accumulate the c_proj matmul over hidden chunks."""
    j = pl.program_id(1)

    @pl.when(j == 0)
    def _():
        acc_ref[...] = jnp.zeros_like(acc_ref)

    h = jnp.dot(x_ref[...], wfc_ref[...], preferred_element_type=jnp.float32)
    h = jnp.square(jnp.maximum(h, 0.0)).astype(jnp.bfloat16)
    acc_ref[...] += jnp.dot(h, wproj_ref[...],
                            preferred_element_type=jnp.float32)

    @pl.when(j == pl.num_programs(1) - 1)
    def _():
        o_ref[...] = acc_ref[...].astype(o_ref.dtype)


# ----------------------------------------------------------------------------
# Tiling helpers
# ----------------------------------------------------------------------------
def _round_up(x, m):
    return -(-x // m) * m


def _pick_tile(n, cap, base):
    """Largest multiple of `base` that divides n and is <= cap (else n if n<=cap)."""
    if n <= cap:
        return n
    t = cap - cap % base
    while t >= base:
        if n % t == 0:
            return t
        t -= base
    return cap  # caller must pad in this case


def _choose_tm(m, cap=256):
    """Pick an M tile (multiple of 16, bf16 sublane packing) and padded M."""
    m16 = _round_up(m, 16)
    if m16 <= cap:
        return m16, m16
    t = cap
    while t >= 16:
        if m16 % t == 0:
            return t, m16
        t -= 16
    # No clean divisor: pad M up to a multiple of `cap`.
    return cap, _round_up(m, cap)


def _num_tensorcores():
    """Best-effort core count query; used only to gate the v7x 2-block split."""
    try:
        info = pltpu.get_tpu_info()
        for attr in ("num_cores", "core_count", "num_tensorcores",
                     "cores_per_chip", "tensorcore_count"):
            v = getattr(info, attr, None)
            if isinstance(v, int) and v > 0:
                return v
    except Exception:
        pass
    return 1


# ----------------------------------------------------------------------------
# MLP forward (matches MLP.forward: c_proj(relu(c_fc(x)).square()))
# ----------------------------------------------------------------------------
def mlp_forward(params, x, out_dtype=jnp.bfloat16):
    lead = x.shape[:-1]
    K = x.shape[-1]
    wfc = params["c_fc_w"]        # [K, H]  bf16
    wproj = params["c_proj_w"]    # [H, D]  bf16
    assert wfc.shape[0] == K
    H = wfc.shape[1]
    assert wproj.shape[0] == H
    D = wproj.shape[1]

    x2 = x.reshape(-1, K).astype(jnp.bfloat16)
    M = x2.shape[0]

    tm, m_pad = _choose_tm(M)
    # v7x (2 TensorCores): make sure the parallel M axis has >= 2 blocks by
    # splitting tm (keeps the output store full-lane-width).  Single-core
    # chips (v5e / v6e) skip this — the split buys nothing there.
    if _num_tensorcores() >= 2 and m_pad // tm < 2 and tm % 32 == 0:
        tm //= 2
    if m_pad != M:
        x2 = jnp.pad(x2, ((0, m_pad - M), (0, 0)))
    m_blocks = m_pad // tm

    # Keep both weight matrices VMEM-resident when they fit comfortably
    # (budget chosen to be safe on v7x's 64 MiB VMEM with 32 MiB scoped);
    # otherwise tile the hidden dim and accumulate the c_proj matmul.
    weight_bytes = 2 * (K * H + H * D)
    th = H if weight_bytes <= 12 * 1024 * 1024 else _pick_tile(H, 1024, 128)
    assert H % th == 0, (H, th)
    n_h = H // th

    if n_h == 1:
        grid = (m_blocks,)
        in_specs = [pl.BlockSpec((tm, K), lambda i: (i, 0)),
                    pl.BlockSpec((K, H), lambda i: (0, 0)),
                    pl.BlockSpec((H, D), lambda i: (0, 0))]
        out_specs = pl.BlockSpec((tm, D), lambda i: (i, 0))
        scratch = []
        kernel = _fused_mlp_kernel_single
        dims = ("parallel",)
    else:
        grid = (m_blocks, n_h)
        in_specs = [pl.BlockSpec((tm, K), lambda i, j: (i, 0)),
                    pl.BlockSpec((K, th), lambda i, j: (0, j)),
                    pl.BlockSpec((th, D), lambda i, j: (j, 0))]
        out_specs = pl.BlockSpec((tm, D), lambda i, j: (i, 0))
        scratch = [pltpu.VMEM((tm, D), jnp.float32)]
        kernel = _fused_mlp_kernel_acc
        dims = ("parallel", "arbitrary")

    out = pl.pallas_call(
        kernel,
        out_shape=jax.ShapeDtypeStruct((m_pad, D), out_dtype),
        grid_spec=pltpu.PrefetchScalarGridSpec(
            num_scalar_prefetch=0,
            grid=grid,
            in_specs=in_specs,
            out_specs=out_specs,
            scratch_shapes=scratch),
        compiler_params=pltpu.CompilerParams(
            dimension_semantics=dims,
            vmem_limit_bytes=32 * 1024 * 1024),
    )(x2, wfc, wproj)

    if m_pad != M:
        out = out[:M]
    return out.reshape(*lead, D)


def mlp_reference(params, x, out_dtype=jnp.bfloat16):
    """Pure-JAX reference with the same bf16-operand / f32-accum numerics."""
    lead = x.shape[:-1]
    K = x.shape[-1]
    xb = x.reshape(-1, K).astype(jnp.bfloat16)
    h = jnp.dot(xb, params["c_fc_w"], preferred_element_type=jnp.float32)
    h = jnp.square(jnp.maximum(h, 0.0)).astype(jnp.bfloat16)
    out = jnp.dot(h, params["c_proj_w"], preferred_element_type=jnp.float32)
    return out.astype(out_dtype).reshape(*lead, params["c_proj_w"].shape[1])


# ----------------------------------------------------------------------------
# Deterministic parameter init (CastedLinear.reset_parameters for c_fc).
# Weights are stored PRE-TRANSPOSED to [in_features, out_features] bf16 so the
# kernel runs a plain NN contraction (no XLU transposes of the weight tile).
# ----------------------------------------------------------------------------
def init_params(key, dim):
    hdim = 4 * dim
    k_fc, k_proj = jax.random.split(key)
    std = 0.5 * dim ** -0.5
    bound = (3.0 ** 0.5) * std
    c_fc_w = jax.random.uniform(k_fc, (hdim, dim), jnp.float32, -bound, bound)
    # NOTE: the reference module zero-inits c_proj.weight (a training-time
    # choice that would make the output identically zero); use small random
    # values so the kernel computes a non-trivial, checkable result.
    c_proj_w = 0.02 * jax.random.normal(k_proj, (dim, hdim), jnp.float32)
    return {"c_fc_w": jnp.asarray(c_fc_w.T, jnp.bfloat16),      # [dim,  hdim]
            "c_proj_w": jnp.asarray(c_proj_w.T, jnp.bfloat16)}  # [hdim, dim]


if __name__ == "__main__":
    dim = 128             # model dim; hidden = 4 * dim = 512
    B, T = 2, 64          # small, shape-consistent activations: x [B, T, dim]

    key = jax.random.PRNGKey(0)
    pkey, xkey = jax.random.split(key)
    params = init_params(pkey, dim)
    x = jax.random.normal(xkey, (B, T, dim), jnp.float32)

    fwd = jax.jit(mlp_forward)
    out = fwd(params, x)
    jax.block_until_ready(out)

    assert out.shape == (B, T, dim), out.shape
    assert bool(jnp.all(jnp.isfinite(out.astype(jnp.float32))))

    ref = jax.jit(mlp_reference)(params, x)
    jax.block_until_ready(ref)
    np.testing.assert_allclose(np.asarray(out, dtype=np.float32),
                               np.asarray(ref, dtype=np.float32),
                               rtol=2e-2, atol=2e-2)

    print("KERNEL_OK")
</pallas_src>

<mosaic_0001>
module attributes {stable_mosaic.version = 11 : i64} {
  func.func @_fused_mlp_kernel_single(%arg0: i32, %arg1: memref<128x128xbf16, #tpu.memory_space<vmem>>, %arg2: memref<128x512xbf16, #tpu.memory_space<vmem>>, %arg3: memref<512x128xbf16, #tpu.memory_space<vmem>>, %arg4: memref<128x128xbf16, #tpu.memory_space<vmem>>) attributes {dimension_semantics = [#tpu.dimension_semantics<parallel>], iteration_bounds = array<i64: 1>, scalar_prefetch = 0 : i64, scratch_operands = 0 : i64, tpu.core_type = #tpu.core_type<tc>, window_params = [{transform_indices = @transform_0, window_bounds = array<i64: 128, 128>}, {pipeline_mode = #tpu.pipeline_mode<synchronous>, transform_indices = @transform_1, window_bounds = array<i64: 128, 512>}, {pipeline_mode = #tpu.pipeline_mode<synchronous>, transform_indices = @transform_2, window_bounds = array<i64: 512, 128>}, {transform_indices = @transform_3, window_bounds = array<i64: 128, 128>}]} {
    %c0 = arith.constant 0 : index
    %c0_0 = arith.constant 0 : index
    %0 = vector.load %arg1[%c0, %c0_0] : memref<128x128xbf16, #tpu.memory_space<vmem>>, vector<128x128xbf16>
    %c0_1 = arith.constant 0 : index
    %c0_2 = arith.constant 0 : index
    %1 = vector.load %arg2[%c0_1, %c0_2] : memref<128x512xbf16, #tpu.memory_space<vmem>>, vector<128x512xbf16>
    %cst = arith.constant dense<0.000000e+00> : vector<128x512xf32>
    %2 = tpu.matmul %0, %1, %cst {dimension_numbers = #tpu.dot_dimension_numbers<[1], [0], [0], [1], [0, 0, 1, 1], [], []>} : vector<128x128xbf16>, vector<128x512xbf16>, vector<128x512xf32> -> vector<128x512xf32>
    %cst_3 = arith.constant 0.000000e+00 : f32
    %3 = vector.broadcast %cst_3 : f32 to vector<128x512xf32>
    %4 = arith.maximumf %2, %3 : vector<128x512xf32>
    %5 = arith.mulf %4, %4 : vector<128x512xf32>
    %6 = arith.truncf %5 : vector<128x512xf32> to vector<128x512xbf16>
    %c0_4 = arith.constant 0 : index
    %c0_5 = arith.constant 0 : index
    %7 = vector.load %arg3[%c0_4, %c0_5] : memref<512x128xbf16, #tpu.memory_space<vmem>>, vector<512x128xbf16>
    %cst_6 = arith.constant dense<0.000000e+00> : vector<128x128xf32>
    %8 = tpu.matmul %6, %7, %cst_6 {dimension_numbers = #tpu.dot_dimension_numbers<[1], [0], [0], [1], [0, 0, 1, 1], [], []>} : vector<128x512xbf16>, vector<512x128xbf16>, vector<128x128xf32> -> vector<128x128xf32>
    %9 = arith.truncf %8 : vector<128x128xf32> to vector<128x128xbf16>
    %c0_7 = arith.constant 0 : index
    %c0_8 = arith.constant 0 : index
    %10 = vector.load %arg4[%c0_7, %c0_8] : memref<128x128xbf16, #tpu.memory_space<vmem>>, vector<128x128xbf16>
    tpu.vector_store %arg4[%c0_7, %c0_8], %9 {strides = array<i32>} : memref<128x128xbf16, #tpu.memory_space<vmem>>, vector<128x128xbf16>,
    return
  }
  func.func @transform_0(%arg0: i32) -> (i32, i32) {
    %c0_i32 = arith.constant 0 : i32
    %c0_i32_0 = arith.constant 0 : i32
    return %arg0, %c0_i32 : i32, i32
  }
  func.func @transform_1(%arg0: i32) -> (i32, i32) {
    %c0_i32 = arith.constant 0 : i32
    %c0_i32_0 = arith.constant 0 : i32
    %c0_i32_1 = arith.constant 0 : i32
    return %c0_i32, %c0_i32_0 : i32, i32
  }
  func.func @transform_2(%arg0: i32) -> (i32, i32) {
    %c0_i32 = arith.constant 0 : i32
    %c0_i32_0 = arith.constant 0 : i32
    %c0_i32_1 = arith.constant 0 : i32
    return %c0_i32, %c0_i32_0 : i32, i32
  }
  func.func @transform_3(%arg0: i32) -> (i32, i32) {
    %c0_i32 = arith.constant 0 : i32
    %c0_i32_0 = arith.constant 0 : i32
    return %arg0, %c0_i32 : i32, i32
  }
}

</mosaic_0001>

<llo_original>
// kernel: mlp_forward.1
$region0: #{mlp_forward.1}
  #allocation0 [shape = 'u32[]', space=smem, size = 0x4, offset = 0x4, fixed_abs, tag = 'smem constant byte address 0x4 - core index']
  #allocation1 [shape = 'u32[144,128]{1,0:T(1,128)}', space=vmem, size = 0x12000, scoped, tag = 'internal scratch']
  %s0 = inlined_call_operand.vmem [shape: bf16[128,128], index: 0, kind: input, shape index: {}]
  %s1 = inlined_call_operand.hbm [shape: bf16[128,512], index: 1, kind: input, shape index: {}]
  %s2 = inlined_call_operand.hbm [shape: bf16[512,128], index: 2, kind: input, shape index: {}]
  %s3 = inlined_call_operand.hbm [shape: bf16[128,128], index: 3, kind: output, shape index: {}]
  %s4 = sld [smem:[#allocation0]]
  $region30: #{mlp_forward.1} parent=0
    _
  %s6 = ssub.s32 1, %s4
  %s7 = scalar_select 0, %s6, %s4
  $region1: #{mlp_forward.1} parent=0
    #allocation2 [shape = 'u8[131072]{0}', space=vmem, size = 0x20000, scoped, tag = 'input window, operand 1, single buffered']
    #allocation3 [shape = 's32[1]{0}', space=sflag, size = 0x4, scoped, tag = 'scoped memory for mlp_forward.1']
    #allocation4 [shape = 's32[1]{0}', space=sflag, size = 0x4, scoped, tag = 'scoped memory for mlp_forward.1']
    #allocation5 [shape = 'u8[131072]{0}', space=vmem, size = 0x20000, scoped, tag = 'input window, operand 2, single buffered']
    #allocation6 [shape = 's32[1]{0}', space=sflag, size = 0x4, scoped, tag = 'scoped memory for mlp_forward.1']
    #allocation7 [shape = 'u8[32768]{0}', space=vmem, size = 0x8000, scoped, tag = 'output window, operand 0, single buffered']
    %8 = vsyncpa [#allocation3], 0
    %9 = vsyncpa [#allocation6], 0
    %10 = vsyncpa [#allocation4], 0
    // Predicated region
    $region2: #{mlp_forward.1} parent=1 // pred_check
      _
    $region3: #{mlp_forward.1} parent=1 // pred_check_branch
      %12 = sbr.rel (0) target = $region5
    $region4: #{mlp_forward.1} parent=1 // pred_region
      _
    $region5: #{mlp_forward.1} parent=1 // pred_fallthru
      _
    // Predicated region
    $region6: #{mlp_forward.1} parent=1 // pred_check
      _
    $region7: #{mlp_forward.1} parent=1 // pred_check_branch
      %14 = sbr.rel (0) target = $region9
    $region8: #{mlp_forward.1} parent=1 // pred_region
      %s16 = ssub.s32 4096, 4096
      %17 = vsyncadd [#allocation3], %s16
      %s18 = sshll.u32 [#allocation2], 4
      %s19 = int_to_ptr.vmem [resolvable:$true] %s18
      %24 = dma.hbm_to_vmem [thread:$0]  %s1, 4096, %s19, [#allocation3], 256, 256, 16
    $region9: #{mlp_forward.1} parent=1 // pred_fallthru
      _
    // Predicated region
    $region10: #{mlp_forward.1} parent=1 // pred_check
      _
    $region11: #{mlp_forward.1} parent=1 // pred_check_branch
      %26 = sbr.rel (0) target = $region13
    $region12: #{mlp_forward.1} parent=1 // pred_region
      %s28 = ssub.s32 4096, 4096
      %29 = vsyncadd [#allocation6], %s28
      %s30 = sshll.u32 [#allocation5], 4
      %s31 = int_to_ptr.vmem [resolvable:$true] %s30
      %36 = dma.hbm_to_vmem [thread:$0]  %s2, 4096, %s31, [#allocation6], 64, 64, 4
    $region13: #{mlp_forward.1} parent=1 // pred_fallthru
      _
    // Predicated region
    $region14: #{mlp_forward.1} parent=1 // pred_check
      _
    $region15: #{mlp_forward.1} parent=1 // pred_check_branch
      %38 = sbr.rel (0) target = $region17
    $region16: #{mlp_forward.1} parent=1 // pred_region
      %39 = dma.done [#allocation3], 4096
    $region17: #{mlp_forward.1} parent=1 // pred_fallthru
      _
    // Predicated region
    $region18: #{mlp_forward.1} parent=1 // pred_check
      _
    $region19: #{mlp_forward.1} parent=1 // pred_check_branch
      %41 = sbr.rel (0) target = $region21
    $region20: #{mlp_forward.1} parent=1 // pred_region
      %42 = dma.done [#allocation6], 4096
    $region21: #{mlp_forward.1} parent=1 // pred_fallthru
      _
    %v44 = vld [vmem:[%s0] sm:$0xf]
    %v45 = vld [vmem:[%s0 + $0x4] sm:$0xf]
    %v46 = vld [vmem:[%s0 + $0x8] sm:$0xf]
    %v47 = vld [vmem:[%s0 + $0xc] sm:$0xf]
    %v48 = vld [vmem:[%s0 + $0x10] sm:$0xf]
    %v49 = vld [vmem:[%s0 + $0x14] sm:$0xf]
    %v50 = vld [vmem:[%s0 + $0x18] sm:$0xf]
    %v51 = vld [vmem:[%s0 + $0x1c] sm:$0xf]
    %v52 = vld [vmem:[%s0 + $0x20] sm:$0xf]
    %v53 = vld [vmem:[%s0 + $0x24] sm:$0xf]
    %v54 = vld [vmem:[%s0 + $0x28] sm:$0xf]
    %v55 = vld [vmem:[%s0 + $0x2c] sm:$0xf]
    %v56 = vld [vmem:[%s0 + $0x30] sm:$0xf]
    %v57 = vld [vmem:[%s0 + $0x34] sm:$0xf]
    %v58 = vld [vmem:[%s0 + $0x38] sm:$0xf]
    %v59 = vld [vmem:[%s0 + $0x3c] sm:$0xf]
    %v60 = vld [vmem:[#allocation2] sm:$0xff]
    %v61 = vld [vmem:[#allocation2 + $0x8] sm:$0xff]
    %v62 = vld [vmem:[#allocation2 + $0x10] sm:$0xff]
    %v63 = vld [vmem:[#allocation2 + $0x18] sm:$0xff]
    %v64 = vld [vmem:[#allocation2 + $0x20] sm:$0xff]
    %v65 = vld [vmem:[#allocation2 + $0x28] sm:$0xff]
    %v66 = vld [vmem:[#allocation2 + $0x30] sm:$0xff]
    %v67 = vld [vmem:[#allocation2 + $0x38] sm:$0xff]
    %v68 = vld [vmem:[#allocation2 + $0x40] sm:$0xff]
    %v69 = vld [vmem:[#allocation2 + $0x48] sm:$0xff]
    %v70 = vld [vmem:[#allocation2 + $0x50] sm:$0xff]
    %v71 = vld [vmem:[#allocation2 + $0x58] sm:$0xff]
    %v72 = vld [vmem:[#allocation2 + $0x60] sm:$0xff]
    %v73 = vld [vmem:[#allocation2 + $0x68] sm:$0xff]
    %v74 = vld [vmem:[#allocation2 + $0x70] sm:$0xff]
    %v75 = vld [vmem:[#allocation2 + $0x78] sm:$0xff]
    %v76 = vld [vmem:[#allocation2 + $0x80] sm:$0xff]
    %v77 = vld [vmem:[#allocation2 + $0x88] sm:$0xff]
    %v78 = vld [vmem:[#allocation2 + $0x90] sm:$0xff]
    %v79 = vld [vmem:[#allocation2 + $0x98] sm:$0xff]
    %v80 = vld [vmem:[#allocation2 + $0xa0] sm:$0xff]
    %v81 = vld [vmem:[#allocation2 + $0xa8] sm:$0xff]
    %v82 = vld [vmem:[#allocation2 + $0xb0] sm:$0xff]
    %v83 = vld [vmem:[#allocation2 + $0xb8] sm:$0xff]
    %v84 = vld [vmem:[#allocation2 + $0xc0] sm:$0xff]
    %v85 = vld [vmem:[#allocation2 + $0xc8] sm:$0xff]
    %v86 = vld [vmem:[#allocation2 + $0xd0] sm:$0xff]
    %v87 = vld [vmem:[#allocation2 + $0xd8] sm:$0xff]
    %v88 = vld [vmem:[#allocation2 + $0xe0] sm:$0xff]
    %v89 = vld [vmem:[#allocation2 + $0xe8] sm:$0xff]
    %v90 = vld [vmem:[#allocation2 + $0xf0] sm:$0xff]
    %v91 = vld [vmem:[#allocation2 + $0xf8] sm:$0xff]
    %v108 = vunpack.c.l.b16 %v44
    %v109 = vunpack.c.l.b16 %v45
    %v110 = vunpack.c.l.b16 %v46
    %v111 = vunpack.c.l.b16 %v47
    %v112 = vunpack.c.l.b16 %v48
    %v113 = vunpack.c.l.b16 %v49
    %v114 = vunpack.c.l.b16 %v50
    %v115 = vunpack.c.l.b16 %v51
    %v116 = vunpack.c.l.b16 %v52
    %v117 = vunpack.c.l.b16 %v53
    %v118 = vunpack.c.l.b16 %v54
    %v119 = vunpack.c.l.b16 %v55
    %v120 = vunpack.c.l.b16 %v56
    %v121 = vunpack.c.l.b16 %v57
    %v122 = vunpack.c.l.b16 %v58
    %v123 = vunpack.c.l.b16 %v59
    %v124 = vpack.c.b16 %v109, %v108
    %v125 = vpack.c.b16 %v111, %v110
    %v126 = vpack.c.b16 %v113, %v112
    %v127 = vpack.c.b16 %v115, %v114
    %v128 = vpack.c.b16 %v117, %v116
    %v129 = vpack.c.b16 %v119, %v118
    %v130 = vpack.c.b16 %v121, %v120
    %v131 = vpack.c.b16 %v123, %v122
    %v172 = vunpack.c.l.b16 %v60
    %v173 = vunpack.c.h.b16 %v60
    %v174 = vunpack.c.l.b16 %v61
    %v175 = vunpack.c.h.b16 %v61
    %v176 = vunpack.c.l.b16 %v62
    %v177 = vunpack.c.h.b16 %v62
    %v178 = vunpack.c.l.b16 %v63
    %v179 = vunpack.c.h.b16 %v63
    %v180 = vunpack.c.l.b16 %v64
    %v181 = vunpack.c.h.b16 %v64
    %v182 = vunpack.c.l.b16 %v65
    %v183 = vunpack.c.h.b16 %v65
    %v184 = vunpack.c.l.b16 %v66
    %v185 = vunpack.c.h.b16 %v66
    %v186 = vunpack.c.l.b16 %v67
    %v187 = vunpack.c.h.b16 %v67
    %v188 = vunpack.c.l.b16 %v68
    %v189 = vunpack.c.h.b16 %v68
    %v190 = vunpack.c.l.b16 %v69
    %v191 = vunpack.c.h.b16 %v69
    %v192 = vunpack.c.l.b16 %v70
    %v193 = vunpack.c.h.b16 %v70
    %v194 = vunpack.c.l.b16 %v71
    %v195 = vunpack.c.h.b16 %v71
    %v196 = vunpack.c.l.b16 %v72
    %v197 = vunpack.c.h.b16 %v72
    %v198 = vunpack.c.l.b16 %v73
    %v199 = vunpack.c.h.b16 %v73
    %v200 = vunpack.c.l.b16 %v74
    %v201 = vunpack.c.h.b16 %v74
    %v202 = vunpack.c.l.b16 %v75
    %v203 = vunpack.c.h.b16 %v75
    %v204 = vunpack.c.l.b16 %v76
    %v205 = vunpack.c.h.b16 %v76
    %v206 = vunpack.c.l.b16 %v77
    %v207 = vunpack.c.h.b16 %v77
    %v208 = vunpack.c.l.b16 %v78
    %v209 = vunpack.c.h.b16 %v78
    %v210 = vunpack.c.l.b16 %v79
    %v211 = vunpack.c.h.b16 %v79
    %v212 = vunpack.c.l.b16 %v80
    %v213 = vunpack.c.h.b16 %v80
    %v214 = vunpack.c.l.b16 %v81
    %v215 = vunpack.c.h.b16 %v81
    %v216 = vunpack.c.l.b16 %v82
    %v217 = vunpack.c.h.b16 %v82
    %v218 = vunpack.c.l.b16 %v83
    %v219 = vunpack.c.h.b16 %v83
    %v220 = vunpack.c.l.b16 %v84
    %v221 = vunpack.c.h.b16 %v84
    %v222 = vunpack.c.l.b16 %v85
    %v223 = vunpack.c.h.b16 %v85
    %v224 = vunpack.c.l.b16 %v86
    %v225 = vunpack.c.h.b16 %v86
    %v226 = vunpack.c.l.b16 %v87
    %v227 = vunpack.c.h.b16 %v87
    %v228 = vunpack.c.l.b16 %v88
    %v229 = vunpack.c.h.b16 %v88
    %v230 = vunpack.c.l.b16 %v89
    %v231 = vunpack.c.h.b16 %v89
    %v232 = vunpack.c.l.b16 %v90
    %v233 = vunpack.c.h.b16 %v90
    %v234 = vunpack.c.l.b16 %v91
    %v235 = vunpack.c.h.b16 %v91
    %v236 = vpack.c.b16 %v176, %v172
    %v237 = vpack.c.b16 %v177, %v173
    %v238 = vpack.c.b16 %v178, %v174
    %v239 = vpack.c.b16 %v179, %v175
    %v240 = vpack.c.b16 %v184, %v180
    %v241 = vpack.c.b16 %v185, %v181
    %v242 = vpack.c.b16 %v186, %v182
    %v243 = vpack.c.b16 %v187, %v183
    %v244 = vpack.c.b16 %v192, %v188
    %v245 = vpack.c.b16 %v193, %v189
    %v246 = vpack.c.b16 %v194, %v190
    %v247 = vpack.c.b16 %v195, %v191
    %v248 = vpack.c.b16 %v200, %v196
    %v249 = vpack.c.b16 %v201, %v197
    %v250 = vpack.c.b16 %v202, %v198
    %v251 = vpack.c.b16 %v203, %v199
    %v252 = vpack.c.b16 %v208, %v204
    %v253 = vpack.c.b16 %v209, %v205
    %v254 = vpack.c.b16 %v210, %v206
    %v255 = vpack.c.b16 %v211, %v207
    %v256 = vpack.c.b16 %v216, %v212
    %v257 = vpack.c.b16 %v217, %v213
    %v258 = vpack.c.b16 %v218, %v214
    %v259 = vpack.c.b16 %v219, %v215
    %v260 = vpack.c.b16 %v224, %v220
    %v261 = vpack.c.b16 %v225, %v221
    %v262 = vpack.c.b16 %v226, %v222
    %v263 = vpack.c.b16 %v227, %v223
    %v264 = vpack.c.b16 %v232, %v228
    %v265 = vpack.c.b16 %v233, %v229
    %v266 = vpack.c.b16 %v234, %v230
    %v267 = vpack.c.b16 %v235, %v231
    %300 = vmatprep.subr.bf16.mxu0 %v265
    %301 = vmatpush1.bf16.msra.mxu0 %v264
    %302 = vmatprep.subr.bf16.mxu0 %v261
    %303 = vmatpush1.bf16.msra.mxu0 %v260
    %304 = vmatprep.subr.bf16.mxu0 %v257
    %305 = vmatpush1.bf16.msra.mxu0 %v256
    %306 = vmatprep.subr.bf16.mxu0 %v253
    %307 = vmatpush1.bf16.msra.mxu0 %v252
    %308 = vmatprep.subr.bf16.mxu0 %v249
    %309 = vmatpush1.bf16.msra.mxu0 %v248
    %310 = vmatprep.subr.bf16.mxu0 %v245
    %311 = vmatpush1.bf16.msra.mxu0 %v244
    %312 = vmatprep.subr.bf16.mxu0 %v241
    %313 = vmatpush1.bf16.msra.mxu0 %v240
    %314 = vmatprep.subr.bf16.mxu0 %v237
    %315 = vmatpush1.bf16.msra.mxu0 %v236
    %316 = vmatprep.subr.bf16.mxu0 0
    %317 = vmatpush2.bf16.msra.mxu0 0
    %318 = vmatprep.subr.bf16.mxu0 0
    %319 = vmatpush2.bf16.msra.mxu0 0
    %320 = vmatprep.subr.bf16.mxu0 0
    %321 = vmatpush2.bf16.msra.mxu0 0
    %322 = vmatprep.subr.bf16.mxu0 0
    %323 = vmatpush2.bf16.msra.mxu0 0
    %324 = vmatprep.subr.bf16.mxu0 0
    %325 = vmatpush2.bf16.msra.mxu0 0
    %326 = vmatprep.subr.bf16.mxu0 0
    %327 = vmatpush2.bf16.msra.mxu0 0
    %328 = vmatprep.subr.bf16.mxu0 0
    %329 = vmatpush2.bf16.msra.mxu0 0
    %330 = vmatprep.subr.bf16.mxu0 0
    %331 = vmatpush2.bf16.msra.mxu0 0
    %332 = vmatprep.mubr.bf16.mxu0 0
    %333 = vmatmul.mubr.bf16.gmra.mxu0 %v124
    %v334 = vpop.f32.mrf.mxu0
    %v335 = vadd.f32 0.0, %v334
    %v336 = vpop.f32.mrf.mxu0
    %v337 = vadd.f32 0.0, %v336
    %v338 = vpop.f32.mrf.mxu0
    %v339 = vadd.f32 0.0, %v338
    %v340 = vpop.f32.mrf.mxu0
    %v341 = vadd.f32 0.0, %v340
    %342 = vmatprep.mubr.bf16.mxu0 0
    %343 = vmatmul.mubr.bf16.gmra.mxu0 %v125
    %v344 = vpop.f32.mrf.mxu0
    %v345 = vadd.f32 0.0, %v344
    %v346 = vpop.f32.mrf.mxu0
    %v347 = vadd.f32 0.0, %v346
    %v348 = vpop.f32.mrf.mxu0
    %v349 = vadd.f32 0.0, %v348
    %v350 = vpop.f32.mrf.mxu0
    %v351 = vadd.f32 0.0, %v350
    %352 = vmatprep.mubr.bf16.mxu0 0
    %353 = vmatmul.mubr.bf16.gmra.mxu0 %v126
    %v354 = vpop.f32.mrf.mxu0
    %v355 = vadd.f32 0.0, %v354
    %v356 = vpop.f32.mrf.mxu0
    %v357 = vadd.f32 0.0, %v356
    %v358 = vpop.f32.mrf.mxu0
    %v359 = vadd.f32 0.0, %v358
    %v360 = vpop.f32.mrf.mxu0
    %v361 = vadd.f32 0.0, %v360
    %362 = vmatprep.mubr.bf16.mxu0 0
    %363 = vmatmul.mubr.bf16.gmra.mxu0 %v127
    %v364 = vpop.f32.mrf.mxu0
    %v365 = vadd.f32 0.0, %v364
    %v366 = vpop.f32.mrf.mxu0
    %v367 = vadd.f32 0.0, %v366
    %v368 = vpop.f32.mrf.mxu0
    %v369 = vadd.f32 0.0, %v368
    %v370 = vpop.f32.mrf.mxu0
    %v371 = vadd.f32 0.0, %v370
    %372 = vmatprep.mubr.bf16.mxu0 0
    %373 = vmatmul.mubr.bf16.gmra.mxu0 %v128
    %v374 = vpop.f32.mrf.mxu0
    %v375 = vadd.f32 0.0, %v374
    %v376 = vpop.f32.mrf.mxu0
    %v377 = vadd.f32 0.0, %v376
    %v378 = vpop.f32.mrf.mxu0
    %v379 = vadd.f32 0.0, %v378
    %v380 = vpop.f32.mrf.mxu0
    %v381 = vadd.f32 0.0, %v380
    %382 = vmatprep.mubr.bf16.mxu0 0
    %383 = vmatmul.mubr.bf16.gmra.mxu0 %v129
    %v384 = vpop.f32.mrf.mxu0
    %v385 = vadd.f32 0.0, %v384
    %v386 = vpop.f32.mrf.mxu0
    %v387 = vadd.f32 0.0, %v386
    %v388 = vpop.f32.mrf.mxu0
    %v389 = vadd.f32 0.0, %v388
    %v390 = vpop.f32.mrf.mxu0
    %v391 = vadd.f32 0.0, %v390
    %392 = vmatprep.mubr.bf16.mxu0 0
    %393 = vmatmul.mubr.bf16.gmra.mxu0 %v130
    %v394 = vpop.f32.mrf.mxu0
    %v395 = vadd.f32 0.0, %v394
    %v396 = vpop.f32.mrf.mxu0
    %v397 = vadd.f32 0.0, %v396
    %v398 = vpop.f32.mrf.mxu0
    %v399 = vadd.f32 0.0, %v398
    %v400 = vpop.f32.mrf.mxu0
    %v401 = vadd.f32 0.0, %v400
    %402 = vmatprep.mubr.bf16.mxu0 0
    %403 = vmatmul.mubr.bf16.gmra.mxu0 %v131
    %v404 = vpop.f32.mrf.mxu0
    %v405 = vadd.f32 0.0, %v404
    %v406 = vpop.f32.mrf.mxu0
    %v407 = vadd.f32 0.0, %v406
    %v408 = vpop.f32.mrf.mxu0
    %v409 = vadd.f32 0.0, %v408
    %v410 = vpop.f32.mrf.mxu0
    %v411 = vadd.f32 0.0, %v410
    %412 = vdwg.mxu0
    %413 = vmatprep.subr.bf16.mxu0 %v267
    %414 = vmatpush1.bf16.msra.mxu0 %v266
    %415 = vmatprep.subr.bf16.mxu0 %v263
    %416 = vmatpush1.bf16.msra.mxu0 %v262
    %417 = vmatprep.subr.bf16.mxu0 %v259
    %418 = vmatpush1.bf16.msra.mxu0 %v258
    %419 = vmatprep.subr.bf16.mxu0 %v255
    %420 = vmatpush1.bf16.msra.mxu0 %v254
    %421 = vmatprep.subr.bf16.mxu0 %v251
    %422 = vmatpush1.bf16.msra.mxu0 %v250
    %423 = vmatprep.subr.bf16.mxu0 %v247
    %424 = vmatpush1.bf16.msra.mxu0 %v246
    %425 = vmatprep.subr.bf16.mxu0 %v243
    %426 = vmatpush1.bf16.msra.mxu0 %v242
    %427 = vmatprep.subr.bf16.mxu0 %v239
    %428 = vmatpush1.bf16.msra.mxu0 %v238
    %429 = vmatprep.subr.bf16.mxu0 0
    %430 = vmatpush2.bf16.msra.mxu0 0
    %431 = vmatprep.subr.bf16.mxu0 0
    %432 = vmatpush2.bf16.msra.mxu0 0
    %433 = vmatprep.subr.bf16.mxu0 0
    %434 = vmatpush2.bf16.msra.mxu0 0
    %435 = vmatprep.subr.bf16.mxu0 0
    %436 = vmatpush2.bf16.msra.mxu0 0
    %437 = vmatprep.subr.bf16.mxu0 0
    %438 = vmatpush2.bf16.msra.mxu0 0
    %439 = vmatprep.subr.bf16.mxu0 0
    %440 = vmatpush2.bf16.msra.mxu0 0
    %441 = vmatprep.subr.bf16.mxu0 0
    %442 = vmatpush2.bf16.msra.mxu0 0
    %443 = vmatprep.subr.bf16.mxu0 0
    %444 = vmatpush2.bf16.msra.mxu0 0
    %445 = vmatprep.mubr.bf16.mxu0 0
    %446 = vmatmul.mubr.bf16.gmra.mxu0 %v124
    %v447 = vpop.f32.mrf.mxu0
    %v448 = vadd.f32 0.0, %v447
    %v449 = vpop.f32.mrf.mxu0
    %v450 = vadd.f32 0.0, %v449
    %v451 = vpop.f32.mrf.mxu0
    %v452 = vadd.f32 0.0, %v451
    %v453 = vpop.f32.mrf.mxu0
    %v454 = vadd.f32 0.0, %v453
    %455 = vmatprep.mubr.bf16.mxu0 0
    %456 = vmatmul.mubr.bf16.gmra.mxu0 %v125
    %v457 = vpop.f32.mrf.mxu0
    %v458 = vadd.f32 0.0, %v457
    %v459 = vpop.f32.mrf.mxu0
    %v460 = vadd.f32 0.0, %v459
    %v461 = vpop.f32.mrf.mxu0
    %v462 = vadd.f32 0.0, %v461
    %v463 = vpop.f32.mrf.mxu0
    %v464 = vadd.f32 0.0, %v463
    %465 = vmatprep.mubr.bf16.mxu0 0
    %466 = vmatmul.mubr.bf16.gmra.mxu0 %v126
    %v467 = vpop.f32.mrf.mxu0
    %v468 = vadd.f32 0.0, %v467
    %v469 = vpop.f32.mrf.mxu0
    %v470 = vadd.f32 0.0, %v469
    %v471 = vpop.f32.mrf.mxu0
    %v472 = vadd.f32 0.0, %v471
    %v473 = vpop.f32.mrf.mxu0
    %v474 = vadd.f32 0.0, %v473
    %475 = vmatprep.mubr.bf16.mxu0 0
    %476 = vmatmul.mubr.bf16.gmra.mxu0 %v127
    %v477 = vpop.f32.mrf.mxu0
    %v478 = vadd.f32 0.0, %v477
    %v479 = vpop.f32.mrf.mxu0
    %v480 = vadd.f32 0.0, %v479
    %v481 = vpop.f32.mrf.mxu0
    %v482 = vadd.f32 0.0, %v481
    %v483 = vpop.f32.mrf.mxu0
    %v484 = vadd.f32 0.0, %v483
    %485 = vmatprep.mubr.bf16.mxu0 0
    %486 = vmatmul.mubr.bf16.gmra.mxu0 %v128
    %v487 = vpop.f32.mrf.mxu0
    %v488 = vadd.f32 0.0, %v487
    %v489 = vpop.f32.mrf.mxu0
    %v490 = vadd.f32 0.0, %v489
    %v491 = vpop.f32.mrf.mxu0
    %v492 = vadd.f32 0.0, %v491
    %v493 = vpop.f32.mrf.mxu0
    %v494 = vadd.f32 0.0, %v493
    %495 = vmatprep.mubr.bf16.mxu0 0
    %496 = vmatmul.mubr.bf16.gmra.mxu0 %v129
    %v497 = vpop.f32.mrf.mxu0
    %v498 = vadd.f32 0.0, %v497
    %v499 = vpop.f32.mrf.mxu0
    %v500 = vadd.f32 0.0, %v499
    %v501 = vpop.f32.mrf.mxu0
    %v502 = vadd.f32 0.0, %v501
    %v503 = vpop.f32.mrf.mxu0
    %v504 = vadd.f32 0.0, %v503
    %505 = vmatprep.mubr.bf16.mxu0 0
    %506 = vmatmul.mubr.bf16.gmra.mxu0 %v130
    %v507 = vpop.f32.mrf.mxu0
    %v508 = vadd.f32 0.0, %v507
    %v509 = vpop.f32.mrf.mxu0
    %v510 = vadd.f32 0.0, %v509
    %v511 = vpop.f32.mrf.mxu0
    %v512 = vadd.f32 0.0, %v511
    %v513 = vpop.f32.mrf.mxu0
    %v514 = vadd.f32 0.0, %v513
    %515 = vmatprep.mubr.bf16.mxu0 0
    %516 = vmatmul.mubr.bf16.gmra.mxu0 %v131
    %v517 = vpop.f32.mrf.mxu0
    %v518 = vadd.f32 0.0, %v517
    %v519 = vpop.f32.mrf.mxu0
    %v520 = vadd.f32 0.0, %v519
    %v521 = vpop.f32.mrf.mxu0
    %v522 = vadd.f32 0.0, %v521
    %v523 = vpop.f32.mrf.mxu0
    %v524 = vadd.f32 0.0, %v523
    %525 = vdwg.mxu0
    %v526 = vmax.f32 %v335, 0.0
    %v527 = vmax.f32 %v337, 0.0
    %v528 = vmax.f32 %v448, 0.0
    %v529 = vmax.f32 %v450, 0.0
    %v530 = vmax.f32 %v339, 0.0
    %v531 = vmax.f32 %v341, 0.0
    %v532 = vmax.f32 %v452, 0.0
    %v533 = vmax.f32 %v454, 0.0
    %v534 = vmax.f32 %v345, 0.0
    %v535 = vmax.f32 %v347, 0.0
    %v536 = vmax.f32 %v458, 0.0
    %v537 = vmax.f32 %v460, 0.0
    %v538 = vmax.f32 %v349, 0.0
    %v539 = vmax.f32 %v351, 0.0
    %v540 = vmax.f32 %v462, 0.0
    %v541 = vmax.f32 %v464, 0.0
    %v542 = vmax.f32 %v355, 0.0
    %v543 = vmax.f32 %v357, 0.0
    %v544 = vmax.f32 %v468, 0.0
    %v545 = vmax.f32 %v470, 0.0
    %v546 = vmax.f32 %v359, 0.0
    %v547 = vmax.f32 %v361, 0.0
    %v548 = vmax.f32 %v472, 0.0
    %v549 = vmax.f32 %v474, 0.0
    %v550 = vmax.f32 %v365, 0.0
    %v551 = vmax.f32 %v367, 0.0
    %v552 = vmax.f32 %v478, 0.0
    %v553 = vmax.f32 %v480, 0.0
    %v554 = vmax.f32 %v369, 0.0
    %v555 = vmax.f32 %v371, 0.0
    %v556 = vmax.f32 %v482, 0.0
    %v557 = vmax.f32 %v484, 0.0
    %v558 = vmax.f32 %v375, 0.0
    %v559 = vmax.f32 %v377, 0.0
    %v560 = vmax.f32 %v488, 0.0
    %v561 = vmax.f32 %v490, 0.0
    %v562 = vmax.f32 %v379, 0.0
    %v563 = vmax.f32 %v381, 0.0
    %v564 = vmax.f32 %v492, 0.0
    %v565 = vmax.f32 %v494, 0.0
    %v566 = vmax.f32 %v385, 0.0
    %v567 = vmax.f32 %v387, 0.0
    %v568 = vmax.f32 %v498, 0.0
    %v569 = vmax.f32 %v500, 0.0
    %v570 = vmax.f32 %v389, 0.0
    %v571 = vmax.f32 %v391, 0.0
    %v572 = vmax.f32 %v502, 0.0
    %v573 = vmax.f32 %v504, 0.0
    %v574 = vmax.f32 %v395, 0.0
    %v575 = vmax.f32 %v397, 0.0
    %v576 = vmax.f32 %v508, 0.0
    %v577 = vmax.f32 %v510, 0.0
    %v578 = vmax.f32 %v399, 0.0
    %v579 = vmax.f32 %v401, 0.0
    %v580 = vmax.f32 %v512, 0.0
    %v581 = vmax.f32 %v514, 0.0
    %v582 = vmax.f32 %v405, 0.0
    %v583 = vmax.f32 %v407, 0.0
    %v584 = vmax.f32 %v518, 0.0
    %v585 = vmax.f32 %v520, 0.0
    %v586 = vmax.f32 %v409, 0.0
    %v587 = vmax.f32 %v411, 0.0
    %v588 = vmax.f32 %v522, 0.0
    %v589 = vmax.f32 %v524, 0.0
    %v590 = vmul.f32 %v526, %v526
    %v591 = vmul.f32 %v527, %v527
    %v592 = vmul.f32 %v528, %v528
    %v593 = vmul.f32 %v529, %v529
    %v594 = vmul.f32 %v530, %v530
    %v595 = vmul.f32 %v531, %v531
    %v596 = vmul.f32 %v532, %v532
    %v597 = vmul.f32 %v533, %v533
    %v598 = vmul.f32 %v534, %v534
    %v599 = vmul.f32 %v535, %v535
    %v600 = vmul.f32 %v536, %v536
    %v601 = vmul.f32 %v537, %v537
    %v602 = vmul.f32 %v538, %v538
    %v603 = vmul.f32 %v539, %v539
    %v604 = vmul.f32 %v540, %v540
    %v605 = vmul.f32 %v541, %v541
    %v606 = vmul.f32 %v542, %v542
    %v607 = vmul.f32 %v543, %v543
    %v608 = vmul.f32 %v544, %v544
    %v609 = vmul.f32 %v545, %v545
    %v610 = vmul.f32 %v546, %v546
    %v611 = vmul.f32 %v547, %v547
    %v612 = vmul.f32 %v548, %v548
    %v613 = vmul.f32 %v549, %v549
    %v614 = vmul.f32 %v550, %v550
    %v615 = vmul.f32 %v551, %v551
    %v616 = vmul.f32 %v552, %v552
    %v617 = vmul.f32 %v553, %v553
    %v618 = vmul.f32 %v554, %v554
    %v619 = vmul.f32 %v555, %v555
    %v620 = vmul.f32 %v556, %v556
    %v621 = vmul.f32 %v557, %v557
    %v622 = vmul.f32 %v558, %v558
    %v623 = vmul.f32 %v559, %v559
    %v624 = vmul.f32 %v560, %v560
    %v625 = vmul.f32 %v561, %v561
    %v626 = vmul.f32 %v562, %v562
    %v627 = vmul.f32 %v563, %v563
    %v628 = vmul.f32 %v564, %v564
    %v629 = vmul.f32 %v565, %v565
    %v630 = vmul.f32 %v566, %v566
    %v631 = vmul.f32 %v567, %v567
    %v632 = vmul.f32 %v568, %v568
    %v633 = vmul.f32 %v569, %v569
    %v634 = vmul.f32 %v570, %v570
    %v635 = vmul.f32 %v571, %v571
    %v636 = vmul.f32 %v572, %v572
    %v637 = vmul.f32 %v573, %v573
    %v638 = vmul.f32 %v574, %v574
    %v639 = vmul.f32 %v575, %v575
    %v640 = vmul.f32 %v576, %v576
    %v641 = vmul.f32 %v577, %v577
    %v642 = vmul.f32 %v578, %v578
    %v643 = vmul.f32 %v579, %v579
    %v644 = vmul.f32 %v580, %v580
    %v645 = vmul.f32 %v581, %v581
    %v646 = vmul.f32 %v582, %v582
    %v647 = vmul.f32 %v583, %v583
    %v648 = vmul.f32 %v584, %v584
    %v649 = vmul.f32 %v585, %v585
    %v650 = vmul.f32 %v586, %v586
    %v651 = vmul.f32 %v587, %v587
    %v652 = vmul.f32 %v588, %v588
    %v653 = vmul.f32 %v589, %v589
    %v654 = vpack.c.bf16 %v594, %v590
    %v655 = vpack.c.bf16 %v595, %v591
    %v656 = vpack.c.bf16 %v596, %v592
    %v657 = vpack.c.bf16 %v597, %v593
    %v658 = vpack.c.bf16 %v602, %v598
    %v659 = vpack.c.bf16 %v603, %v599
    %v660 = vpack.c.bf16 %v604, %v600
    %v661 = vpack.c.bf16 %v605, %v601
    %v662 = vpack.c.bf16 %v610, %v606
    %v663 = vpack.c.bf16 %v611, %v607
    %v664 = vpack.c.bf16 %v612, %v608
    %v665 = vpack.c.bf16 %v613, %v609
    %v666 = vpack.c.bf16 %v618, %v614
    %v667 = vpack.c.bf16 %v619, %v615
    %v668 = vpack.c.bf16 %v620, %v616
    %v669 = vpack.c.bf16 %v621, %v617
    %v670 = vpack.c.bf16 %v626, %v622
    %v671 = vpack.c.bf16 %v627, %v623
    %v672 = vpack.c.bf16 %v628, %v624
    %v673 = vpack.c.bf16 %v629, %v625
    %v674 = vpack.c.bf16 %v634, %v630
    %v675 = vpack.c.bf16 %v635, %v631
    %v676 = vpack.c.bf16 %v636, %v632
    %v677 = vpack.c.bf16 %v637, %v633
    %v678 = vpack.c.bf16 %v642, %v638
    %v679 = vpack.c.bf16 %v643, %v639
    %v680 = vpack.c.bf16 %v644, %v640
    %v681 = vpack.c.bf16 %v645, %v641
    %v682 = vpack.c.bf16 %v650, %v646
    %v683 = vpack.c.bf16 %v651, %v647
    %v684 = vpack.c.bf16 %v652, %v648
    %v685 = vpack.c.bf16 %v653, %v649
    %v686 = vld [vmem:[#allocation5] sm:$0xf]
    %v687 = vld [vmem:[#allocation5 + $0x4] sm:$0xf]
    %v688 = vld [vmem:[#allocation5 + $0x8] sm:$0xf]
    %v689 = vld [vmem:[#allocation5 + $0xc] sm:$0xf]
    %v690 = vld [vmem:[#allocation5 + $0x10] sm:$0xf]
    %v691 = vld [vmem:[#allocation5 + $0x14] sm:$0xf]
    %v692 = vld [vmem:[#allocation5 + $0x18] sm:$0xf]
    %v693 = vld [vmem:[#allocation5 + $0x1c] sm:$0xf]
    %v694 = vld [vmem:[#allocation5 + $0x20] sm:$0xf]
    %v695 = vld [vmem:[#allocation5 + $0x24] sm:$0xf]
    %v696 = vld [vmem:[#allocation5 + $0x28] sm:$0xf]
    %v697 = vld [vmem:[#allocation5 + $0x2c] sm:$0xf]
    %v698 = vld [vmem:[#allocation5 + $0x30] sm:$0xf]
    %v699 = vld [vmem:[#allocation5 + $0x34] sm:$0xf]
    %v700 = vld [vmem:[#allocation5 + $0x38] sm:$0xf]
    %v701 = vld [vmem:[#allocation5 + $0x3c] sm:$0xf]
    %v702 = vld [vmem:[#allocation5 + $0x40] sm:$0xf]
    %v703 = vld [vmem:[#allocation5 + $0x44] sm:$0xf]
    %v704 = vld [vmem:[#allocation5 + $0x48] sm:$0xf]
    %v705 = vld [vmem:[#allocation5 + $0x4c] sm:$0xf]
    %v706 = vld [vmem:[#allocation5 + $0x50] sm:$0xf]
    %v707 = vld [vmem:[#allocation5 + $0x54] sm:$0xf]
    %v708 = vld [vmem:[#allocation5 + $0x58] sm:$0xf]
    %v709 = vld [vmem:[#allocation5 + $0x5c] sm:$0xf]
    %v710 = vld [vmem:[#allocation5 + $0x60] sm:$0xf]
    %v711 = vld [vmem:[#allocation5 + $0x64] sm:$0xf]
    %v712 = vld [vmem:[#allocation5 + $0x68] sm:$0xf]
    %v713 = vld [vmem:[#allocation5 + $0x6c] sm:$0xf]
    %v714 = vld [vmem:[#allocation5 + $0x70] sm:$0xf]
    %v715 = vld [vmem:[#allocation5 + $0x74] sm:$0xf]
    %v716 = vld [vmem:[#allocation5 + $0x78] sm:$0xf]
    %v717 = vld [vmem:[#allocation5 + $0x7c] sm:$0xf]
    %v718 = vld [vmem:[#allocation5 + $0x80] sm:$0xf]
    %v719 = vld [vmem:[#allocation5 + $0x84] sm:$0xf]
    %v720 = vld [vmem:[#allocation5 + $0x88] sm:$0xf]
    %v721 = vld [vmem:[#allocation5 + $0x8c] sm:$0xf]
    %v722 = vld [vmem:[#allocation5 + $0x90] sm:$0xf]
    %v723 = vld [vmem:[#allocation5 + $0x94] sm:$0xf]
    %v724 = vld [vmem:[#allocation5 + $0x98] sm:$0xf]
    %v725 = vld [vmem:[#allocation5 + $0x9c] sm:$0xf]
    %v726 = vld [vmem:[#allocation5 + $0xa0] sm:$0xf]
    %v727 = vld [vmem:[#allocation5 + $0xa4] sm:$0xf]
    %v728 = vld [vmem:[#allocation5 + $0xa8] sm:$0xf]
    %v729 = vld [vmem:[#allocation5 + $0xac] sm:$0xf]
    %v730 = vld [vmem:[#allocation5 + $0xb0] sm:$0xf]
    %v731 = vld [vmem:[#allocation5 + $0xb4] sm:$0xf]
    %v732 = vld [vmem:[#allocation5 + $0xb8] sm:$0xf]
    %v733 = vld [vmem:[#allocation5 + $0xbc] sm:$0xf]
    %v734 = vld [vmem:[#allocation5 + $0xc0] sm:$0xf]
    %v735 = vld [vmem:[#allocation5 + $0xc4] sm:$0xf]
    %v736 = vld [vmem:[#allocation5 + $0xc8] sm:$0xf]
    %v737 = vld [vmem:[#allocation5 + $0xcc] sm:$0xf]
    %v738 = vld [vmem:[#allocation5 + $0xd0] sm:$0xf]
    %v739 = vld [vmem:[#allocation5 + $0xd4] sm:$0xf]
    %v740 = vld [vmem:[#allocation5 + $0xd8] sm:$0xf]
    %v741 = vld [vmem:[#allocation5 + $0xdc] sm:$0xf]
    %v742 = vld [vmem:[#allocation5 + $0xe0] sm:$0xf]
    %v743 = vld [vmem:[#allocation5 + $0xe4] sm:$0xf]
    %v744 = vld [vmem:[#allocation5 + $0xe8] sm:$0xf]
    %v745 = vld [vmem:[#allocation5 + $0xec] sm:$0xf]
    %v746 = vld [vmem:[#allocation5 + $0xf0] sm:$0xf]
    %v747 = vld [vmem:[#allocation5 + $0xf4] sm:$0xf]
    %v748 = vld [vmem:[#allocation5 + $0xf8] sm:$0xf]
    %v749 = vld [vmem:[#allocation5 + $0xfc] sm:$0xf]
    %v814 = vunpack.c.l.b16 %v686
    %v815 = vunpack.c.l.b16 %v687
    %v816 = vunpack.c.l.b16 %v688
    %v817 = vunpack.c.l.b16 %v689
    %v818 = vunpack.c.l.b16 %v690
    %v819 = vunpack.c.l.b16 %v691
    %v820 = vunpack.c.l.b16 %v692
    %v821 = vunpack.c.l.b16 %v693
    %v822 = vunpack.c.l.b16 %v694
    %v823 = vunpack.c.l.b16 %v695
    %v824 = vunpack.c.l.b16 %v696
    %v825 = vunpack.c.l.b16 %v697
    %v826 = vunpack.c.l.b16 %v698
    %v827 = vunpack.c.l.b16 %v699
    %v828 = vunpack.c.l.b16 %v700
    %v829 = vunpack.c.l.b16 %v701
    %v830 = vunpack.c.l.b16 %v702
    %v831 = vunpack.c.l.b16 %v703
    %v832 = vunpack.c.l.b16 %v704
    %v833 = vunpack.c.l.b16 %v705
    %v834 = vunpack.c.l.b16 %v706
    %v835 = vunpack.c.l.b16 %v707
    %v836 = vunpack.c.l.b16 %v708
    %v837 = vunpack.c.l.b16 %v709
    %v838 = vunpack.c.l.b16 %v710
    %v839 = vunpack.c.l.b16 %v711
    %v840 = vunpack.c.l.b16 %v712
    %v841 = vunpack.c.l.b16 %v713
    %v842 = vunpack.c.l.b16 %v714
    %v843 = vunpack.c.l.b16 %v715
    %v844 = vunpack.c.l.b16 %v716
    %v845 = vunpack.c.l.b16 %v717
    %v846 = vunpack.c.l.b16 %v718
    %v847 = vunpack.c.l.b16 %v719
    %v848 = vunpack.c.l.b16 %v720
    %v849 = vunpack.c.l.b16 %v721
    %v850 = vunpack.c.l.b16 %v722
    %v851 = vunpack.c.l.b16 %v723
    %v852 = vunpack.c.l.b16 %v724
    %v853 = vunpack.c.l.b16 %v725
    %v854 = vunpack.c.l.b16 %v726
    %v855 = vunpack.c.l.b16 %v727
    %v856 = vunpack.c.l.b16 %v728
    %v857 = vunpack.c.l.b16 %v729
    %v858 = vunpack.c.l.b16 %v730
    %v859 = vunpack.c.l.b16 %v731
    %v860 = vunpack.c.l.b16 %v732
    %v861 = vunpack.c.l.b16 %v733
    %v862 = vunpack.c.l.b16 %v734
    %v863 = vunpack.c.l.b16 %v735
    %v864 = vunpack.c.l.b16 %v736
    %v865 = vunpack.c.l.b16 %v737
    %v866 = vunpack.c.l.b16 %v738
    %v867 = vunpack.c.l.b16 %v739
    %v868 = vunpack.c.l.b16 %v740
    %v869 = vunpack.c.l.b16 %v741
    %v870 = vunpack.c.l.b16 %v742
    %v871 = vunpack.c.l.b16 %v743
    %v872 = vunpack.c.l.b16 %v744
    %v873 = vunpack.c.l.b16 %v745
    %v874 = vunpack.c.l.b16 %v746
    %v875 = vunpack.c.l.b16 %v747
    %v876 = vunpack.c.l.b16 %v748
    %v877 = vunpack.c.l.b16 %v749
    %v878 = vpack.c.b16 %v815, %v814
    %v879 = vpack.c.b16 %v817, %v816
    %v880 = vpack.c.b16 %v819, %v818
    %v881 = vpack.c.b16 %v821, %v820
    %v882 = vpack.c.b16 %v823, %v822
    %v883 = vpack.c.b16 %v825, %v824
    %v884 = vpack.c.b16 %v827, %v826
    %v885 = vpack.c.b16 %v829, %v828
    %v886 = vpack.c.b16 %v831, %v830
    %v887 = vpack.c.b16 %v833, %v832
    %v888 = vpack.c.b16 %v835, %v834
    %v889 = vpack.c.b16 %v837, %v836
    %v890 = vpack.c.b16 %v839, %v838
    %v891 = vpack.c.b16 %v841, %v840
    %v892 = vpack.c.b16 %v843, %v842
    %v893 = vpack.c.b16 %v845, %v844
    %v894 = vpack.c.b16 %v847, %v846
    %v895 = vpack.c.b16 %v849, %v848
    %v896 = vpack.c.b16 %v851, %v850
    %v897 = vpack.c.b16 %v853, %v852
    %v898 = vpack.c.b16 %v855, %v854
    %v899 = vpack.c.b16 %v857, %v856
    %v900 = vpack.c.b16 %v859, %v858
    %v901 = vpack.c.b16 %v861, %v860
    %v902 = vpack.c.b16 %v863, %v862
    %v903 = vpack.c.b16 %v865, %v864
    %v904 = vpack.c.b16 %v867, %v866
    %v905 = vpack.c.b16 %v869, %v868
    %v906 = vpack.c.b16 %v871, %v870
    %v907 = vpack.c.b16 %v873, %v872
    %v908 = vpack.c.b16 %v875, %v874
    %v909 = vpack.c.b16 %v877, %v876
    %942 = vmatprep.subr.bf16.mxu0 0
    %943 = vmatpush1.bf16.msra.mxu0 %v885
    %944 = vmatprep.subr.bf16.mxu0 0
    %945 = vmatpush1.bf16.msra.mxu0 %v884
    %946 = vmatprep.subr.bf16.mxu0 0
    %947 = vmatpush1.bf16.msra.mxu0 %v883
    %948 = vmatprep.subr.bf16.mxu0 0
    %949 = vmatpush1.bf16.msra.mxu0 %v882
    %950 = vmatprep.subr.bf16.mxu0 0
    %951 = vmatpush1.bf16.msra.mxu0 %v881
    %952 = vmatprep.subr.bf16.mxu0 0
    %953 = vmatpush1.bf16.msra.mxu0 %v880
    %954 = vmatprep.subr.bf16.mxu0 0
    %955 = vmatpush1.bf16.msra.mxu0 %v879
    %956 = vmatprep.subr.bf16.mxu0 0
    %957 = vmatpush1.bf16.msra.mxu0 %v878
    %958 = vmatprep.subr.bf16.mxu0 0
    %959 = vmatpush2.bf16.msra.mxu0 %v893
    %960 = vmatprep.subr.bf16.mxu0 0
    %961 = vmatpush2.bf16.msra.mxu0 %v892
    %962 = vmatprep.subr.bf16.mxu0 0
    %963 = vmatpush2.bf16.msra.mxu0 %v891
    %964 = vmatprep.subr.bf16.mxu0 0
    %965 = vmatpush2.bf16.msra.mxu0 %v890
    %966 = vmatprep.subr.bf16.mxu0 0
    %967 = vmatpush2.bf16.msra.mxu0 %v889
    %968 = vmatprep.subr.bf16.mxu0 0
    %969 = vmatpush2.bf16.msra.mxu0 %v888
    %970 = vmatprep.subr.bf16.mxu0 0
    %971 = vmatpush2.bf16.msra.mxu0 %v887
    %972 = vmatprep.subr.bf16.mxu0 0
    %973 = vmatpush2.bf16.msra.mxu0 %v886
    %974 = vmatprep.mubr.bf16.mxu0 %v655
    %975 = vmatmul.mubr.bf16.gmra.mxu0 %v654
    %v976 = vpop.f32.mrf.mxu0
    %v977 = vadd.f32 0.0, %v976
    %v978 = vpop.f32.mrf.mxu0
    %v979 = vpop.f32.mrf.mxu0
    %v980 = vadd.f32 0.0, %v979
    %v981 = vpop.f32.mrf.mxu0
    %982 = vmatprep.mubr.bf16.mxu0 %v659
    %983 = vmatmul.mubr.bf16.gmra.mxu0 %v658
    %v984 = vpop.f32.mrf.mxu0
    %v985 = vadd.f32 0.0, %v984
    %v986 = vpop.f32.mrf.mxu0
    %v987 = vpop.f32.mrf.mxu0
    %v988 = vadd.f32 0.0, %v987
    %v989 = vpop.f32.mrf.mxu0
    %990 = vmatprep.mubr.bf16.mxu0 %v663
    %991 = vmatmul.mubr.bf16.gmra.mxu0 %v662
    %v992 = vpop.f32.mrf.mxu0
    %v993 = vadd.f32 0.0, %v992
    %v994 = vpop.f32.mrf.mxu0
    %v995 = vpop.f32.mrf.mxu0
    %v996 = vadd.f32 0.0, %v995
    %v997 = vpop.f32.mrf.mxu0
    %998 = vmatprep.mubr.bf16.mxu0 %v667
    %999 = vmatmul.mubr.bf16.gmra.mxu0 %v666
    %v1000 = vpop.f32.mrf.mxu0
    %v1001 = vadd.f32 0.0, %v1000
    %v1002 = vpop.f32.mrf.mxu0
    %v1003 = vpop.f32.mrf.mxu0
    %v1004 = vadd.f32 0.0, %v1003
    %v1005 = vpop.f32.mrf.mxu0
    %1006 = vmatprep.mubr.bf16.mxu0 %v671
    %1007 = vmatmul.mubr.bf16.gmra.mxu0 %v670
    %v1008 = vpop.f32.mrf.mxu0
    %v1009 = vadd.f32 0.0, %v1008
    %v1010 = vpop.f32.mrf.mxu0
    %v1011 = vpop.f32.mrf.mxu0
    %v1012 = vadd.f32 0.0, %v1011
    %v1013 = vpop.f32.mrf.mxu0
    %1014 = vmatprep.mubr.bf16.mxu0 %v675
    %1015 = vmatmul.mubr.bf16.gmra.mxu0 %v674
    %v1016 = vpop.f32.mrf.mxu0
    %v1017 = vadd.f32 0.0, %v1016
    %v1018 = vpop.f32.mrf.mxu0
    %v1019 = vpop.f32.mrf.mxu0
    %v1020 = vadd.f32 0.0, %v1019
    %v1021 = vpop.f32.mrf.mxu0
    %1022 = vmatprep.mubr.bf16.mxu0 %v679
    %1023 = vmatmul.mubr.bf16.gmra.mxu0 %v678
    %v1024 = vpop.f32.mrf.mxu0
    %v1025 = vadd.f32 0.0, %v1024
    %v1026 = vpop.f32.mrf.mxu0
    %v1027 = vpop.f32.mrf.mxu0
    %v1028 = vadd.f32 0.0, %v1027
    %v1029 = vpop.f32.mrf.mxu0
    %1030 = vmatprep.mubr.bf16.mxu0 %v683
    %1031 = vmatmul.mubr.bf16.gmra.mxu0 %v682
    %v1032 = vpop.f32.mrf.mxu0
    %v1033 = vadd.f32 0.0, %v1032
    %v1034 = vpop.f32.mrf.mxu0
    %v1035 = vpop.f32.mrf.mxu0
    %v1036 = vadd.f32 0.0, %v1035
    %v1037 = vpop.f32.mrf.mxu0
    %1038 = vdwg.mxu0
    %1039 = vmatprep.subr.bf16.mxu0 0
    %1040 = vmatpush1.bf16.msra.mxu0 %v901
    %1041 = vmatprep.subr.bf16.mxu0 0
    %1042 = vmatpush1.bf16.msra.mxu0 %v900
    %1043 = vmatprep.subr.bf16.mxu0 0
    %1044 = vmatpush1.bf16.msra.mxu0 %v899
    %1045 = vmatprep.subr.bf16.mxu0 0
    %1046 = vmatpush1.bf16.msra.mxu0 %v898
    %1047 = vmatprep.subr.bf16.mxu0 0
    %1048 = vmatpush1.bf16.msra.mxu0 %v897
    %1049 = vmatprep.subr.bf16.mxu0 0
    %1050 = vmatpush1.bf16.msra.mxu0 %v896
    %1051 = vmatprep.subr.bf16.mxu0 0
    %1052 = vmatpush1.bf16.msra.mxu0 %v895
    %1053 = vmatprep.subr.bf16.mxu0 0
    %1054 = vmatpush1.bf16.msra.mxu0 %v894
    %1055 = vmatprep.subr.bf16.mxu0 0
    %1056 = vmatpush2.bf16.msra.mxu0 %v909
    %1057 = vmatprep.subr.bf16.mxu0 0
    %1058 = vmatpush2.bf16.msra.mxu0 %v908
    %1059 = vmatprep.subr.bf16.mxu0 0
    %1060 = vmatpush2.bf16.msra.mxu0 %v907
    %1061 = vmatprep.subr.bf16.mxu0 0
    %1062 = vmatpush2.bf16.msra.mxu0 %v906
    %1063 = vmatprep.subr.bf16.mxu0 0
    %1064 = vmatpush2.bf16.msra.mxu0 %v905
    %1065 = vmatprep.subr.bf16.mxu0 0
    %1066 = vmatpush2.bf16.msra.mxu0 %v904
    %1067 = vmatprep.subr.bf16.mxu0 0
    %1068 = vmatpush2.bf16.msra.mxu0 %v903
    %1069 = vmatprep.subr.bf16.mxu0 0
    %1070 = vmatpush2.bf16.msra.mxu0 %v902
    %1071 = vmatprep.mubr.bf16.mxu0 %v657
    %1072 = vmatmul.mubr.bf16.gmra.mxu0 %v656
    %v1073 = vpop.f32.mrf.mxu0
    %v1074 = vadd.f32 %v977, %v1073
    %v1075 = vpop.f32.mrf.mxu0
    %v1076 = vpop.f32.mrf.mxu0
    %v1077 = vadd.f32 %v980, %v1076
    %v1078 = vpop.f32.mrf.mxu0
    %1079 = vmatprep.mubr.bf16.mxu0 %v661
    %1080 = vmatmul.mubr.bf16.gmra.mxu0 %v660
    %v1081 = vpop.f32.mrf.mxu0
    %v1082 = vadd.f32 %v985, %v1081
    %v1083 = vpop.f32.mrf.mxu0
    %v1084 = vpop.f32.mrf.mxu0
    %v1085 = vadd.f32 %v988, %v1084
    %v1086 = vpop.f32.mrf.mxu0
    %1087 = vmatprep.mubr.bf16.mxu0 %v665
    %1088 = vmatmul.mubr.bf16.gmra.mxu0 %v664
    %v1089 = vpop.f32.mrf.mxu0
    %v1090 = vadd.f32 %v993, %v1089
    %v1091 = vpop.f32.mrf.mxu0
    %v1092 = vpop.f32.mrf.mxu0
    %v1093 = vadd.f32 %v996, %v1092
    %v1094 = vpop.f32.mrf.mxu0
    %1095 = vmatprep.mubr.bf16.mxu0 %v669
    %1096 = vmatmul.mubr.bf16.gmra.mxu0 %v668
    %v1097 = vpop.f32.mrf.mxu0
    %v1098 = vadd.f32 %v1001, %v1097
    %v1099 = vpop.f32.mrf.mxu0
    %v1100 = vpop.f32.mrf.mxu0
    %v1101 = vadd.f32 %v1004, %v1100
    %v1102 = vpop.f32.mrf.mxu0
    %1103 = vmatprep.mubr.bf16.mxu0 %v673
    %1104 = vmatmul.mubr.bf16.gmra.mxu0 %v672
    %v1105 = vpop.f32.mrf.mxu0
    %v1106 = vadd.f32 %v1009, %v1105
    %v1107 = vpop.f32.mrf.mxu0
    %v1108 = vpop.f32.mrf.mxu0
    %v1109 = vadd.f32 %v1012, %v1108
    %v1110 = vpop.f32.mrf.mxu0
    %1111 = vmatprep.mubr.bf16.mxu0 %v677
    %1112 = vmatmul.mubr.bf16.gmra.mxu0 %v676
    %v1113 = vpop.f32.mrf.mxu0
    %v1114 = vadd.f32 %v1017, %v1113
    %v1115 = vpop.f32.mrf.mxu0
    %v1116 = vpop.f32.mrf.mxu0
    %v1117 = vadd.f32 %v1020, %v1116
    %v1118 = vpop.f32.mrf.mxu0
    %1119 = vmatprep.mubr.bf16.mxu0 %v681
    %1120 = vmatmul.mubr.bf16.gmra.mxu0 %v680
    %v1121 = vpop.f32.mrf.mxu0
    %v1122 = vadd.f32 %v1025, %v1121
    %v1123 = vpop.f32.mrf.mxu0
    %v1124 = vpop.f32.mrf.mxu0
    %v1125 = vadd.f32 %v1028, %v1124
    %v1126 = vpop.f32.mrf.mxu0
    %1127 = vmatprep.mubr.bf16.mxu0 %v685
    %1128 = vmatmul.mubr.bf16.gmra.mxu0 %v684
    %v1129 = vpop.f32.mrf.mxu0
    %v1130 = vadd.f32 %v1033, %v1129
    %v1131 = vpop.f32.mrf.mxu0
    %v1132 = vpop.f32.mrf.mxu0
    %v1133 = vadd.f32 %v1036, %v1132
    %v1134 = vpop.f32.mrf.mxu0
    %1135 = vdwg.mxu0
    %v1136 = vpack.c.bf16 %v1077, %v1074
    %v1137 = vpack.c.bf16 %v1085, %v1082
    %v1138 = vpack.c.bf16 %v1093, %v1090
    %v1139 = vpack.c.bf16 %v1101, %v1098
    %v1140 = vpack.c.bf16 %v1109, %v1106
    %v1141 = vpack.c.bf16 %v1117, %v1114
    %v1142 = vpack.c.bf16 %v1125, %v1122
    %v1143 = vpack.c.bf16 %v1133, %v1130
    %v1152 = vunpack.c.l.b16 %v1136
    %v1153 = vunpack.c.h.b16 %v1136
    %v1154 = vunpack.c.l.b16 %v1137
    %v1155 = vunpack.c.h.b16 %v1137
    %v1156 = vunpack.c.l.b16 %v1138
    %v1157 = vunpack.c.h.b16 %v1138
    %v1158 = vunpack.c.l.b16 %v1139
    %v1159 = vunpack.c.h.b16 %v1139
    %v1160 = vunpack.c.l.b16 %v1140
    %v1161 = vunpack.c.h.b16 %v1140
    %v1162 = vunpack.c.l.b16 %v1141
    %v1163 = vunpack.c.h.b16 %v1141
    %v1164 = vunpack.c.l.b16 %v1142
    %v1165 = vunpack.c.h.b16 %v1142
    %v1166 = vunpack.c.l.b16 %v1143
    %v1167 = vunpack.c.h.b16 %v1143
    %v1168 = vpack.c.b16 %v1152, %v1152
    %v1169 = vpack.c.b16 %v1153, %v1153
    %v1170 = vpack.c.b16 %v1154, %v1154
    %v1171 = vpack.c.b16 %v1155, %v1155
    %v1172 = vpack.c.b16 %v1156, %v1156
    %v1173 = vpack.c.b16 %v1157, %v1157
    %v1174 = vpack.c.b16 %v1158, %v1158
    %v1175 = vpack.c.b16 %v1159, %v1159
    %v1176 = vpack.c.b16 %v1160, %v1160
    %v1177 = vpack.c.b16 %v1161, %v1161
    %v1178 = vpack.c.b16 %v1162, %v1162
    %v1179 = vpack.c.b16 %v1163, %v1163
    %v1180 = vpack.c.b16 %v1164, %v1164
    %v1181 = vpack.c.b16 %v1165, %v1165
    %v1182 = vpack.c.b16 %v1166, %v1166
    %v1183 = vpack.c.b16 %v1167, %v1167
    %1200 = vst [vmem:[#allocation7] sm:$0xf] %v1168
    %1201 = vst [vmem:[#allocation7 + $0x4] sm:$0xf] %v1169
    %1202 = vst [vmem:[#allocation7 + $0x8] sm:$0xf] %v1170
    %1203 = vst [vmem:[#allocation7 + $0xc] sm:$0xf] %v1171
    %1204 = vst [vmem:[#allocation7 + $0x10] sm:$0xf] %v1172
    %1205 = vst [vmem:[#allocation7 + $0x14] sm:$0xf] %v1173
    %1206 = vst [vmem:[#allocation7 + $0x18] sm:$0xf] %v1174
    %1207 = vst [vmem:[#allocation7 + $0x1c] sm:$0xf] %v1175
    %1208 = vst [vmem:[#allocation7 + $0x20] sm:$0xf] %v1176
    %1209 = vst [vmem:[#allocation7 + $0x24] sm:$0xf] %v1177
    %1210 = vst [vmem:[#allocation7 + $0x28] sm:$0xf] %v1178
    %1211 = vst [vmem:[#allocation7 + $0x2c] sm:$0xf] %v1179
    %1212 = vst [vmem:[#allocation7 + $0x30] sm:$0xf] %v1180
    %1213 = vst [vmem:[#allocation7 + $0x34] sm:$0xf] %v1181
    %1214 = vst [vmem:[#allocation7 + $0x38] sm:$0xf] %v1182
    %1215 = vst [vmem:[#allocation7 + $0x3c] sm:$0xf] %v1183
    // Predicated region
    $region22: #{mlp_forward.1} parent=1 // pred_check
      _
    $region23: #{mlp_forward.1} parent=1 // pred_check_branch
      %1217 = sbr.rel (0) target = $region25
    $region24: #{mlp_forward.1} parent=1 // pred_region
      %s1219 = ssub.s32 1024, 1024
      %1220 = vsyncadd [#allocation4], %s1219
      %s1221 = sshll.u32 [#allocation7], 4
      %s1222 = int_to_ptr.vmem [resolvable:$true] %s1221
      %1227 = dma.vmem_to_hbm [thread:$0]  %s1222, 1024, %s3, [#allocation4], 64, 64, 4
    $region25: #{mlp_forward.1} parent=1 // pred_fallthru
      _
    // Predicated region
    $region26: #{mlp_forward.1} parent=1 // pred_check
      _
    $region27: #{mlp_forward.1} parent=1 // pred_check_branch
      %1229 = sbr.rel (0) target = $region29
    $region28: #{mlp_forward.1} parent=1 // pred_region
      %1230 = dma.done [#allocation4], 1024
    $region29: #{mlp_forward.1} parent=1 // pred_fallthru
      _
    %1231 = vsyncpa [#allocation3], 1
    %1232 = vsyncpa [#allocation6], 1
    %1233 = vsyncpa [#allocation4], 1

</llo_original>
